<compile_context>
chip_gen: v7x
topology: tpu7x:2x2x1
jax: 0.10.0
libtpu: 0.0.40
codegen_flags: <defaults>
</compile_context>

<pallas_src>
import jax
import jax.numpy as jnp
from jax.experimental import pallas as pl
from jax.experimental.pallas import tpu as pltpu


def alpha_e_kernel(a_ref, e_ref, out_ref):
    # a_ref:   (9, TN)  SoA alpha, row k holds alpha[:, k // 3, k % 3]
    # e_ref:   (3, TN)  SoA Eext
    # out_ref: (3, TN)  SoA output
    a = a_ref[...].astype(jnp.float32)
    e = e_ref[...].astype(jnp.float32)

    e0 = e[0:1, :]
    e1 = e[1:2, :]
    e2 = e[2:3, :]

    rows = []
    for i in range(3):  # unrolled: 3 FMAs per output row, all on dense (1, TN) vectors
        r = (a[3 * i + 0:3 * i + 1, :] * e0
             + a[3 * i + 1:3 * i + 2, :] * e1
             + a[3 * i + 2:3 * i + 3, :] * e2)
        rows.append(r)

    out_ref[...] = jnp.concatenate(rows, axis=0).astype(out_ref.dtype)


def alpha_e(alpha, Eext, *, tn=32768):
    """alpha: (N, 3, 3), Eext: (N, 3) -> (N, 3). Equivalent to matmul(alpha, E[...,None])[...,0]."""
    N = alpha.shape[0]
    assert alpha.shape == (N, 3, 3) and Eext.shape == (N, 3)
    out_dtype = jnp.result_type(alpha.dtype, Eext.dtype)

    if N == 0:
        return jnp.zeros((0, 3), out_dtype)

    # One-time relayout to lane-dense SoA (batch on the lane axis).
    a_t = jnp.transpose(alpha.reshape(N, 9))  # (9, N)
    e_t = jnp.transpose(Eext)                 # (3, N)

    # Lane-axis tile: whole array if small (block dim == full dim is always legal);
    # otherwise a multiple of 128, capped so the parallel axis has >= 2 steps (v7x TCs).
    if N <= 256:
        tn_eff = N
    else:
        half = -(-N // 2)
        tn_eff = max(128, min(tn, ((half + 127) // 128) * 128))
    grid = (pl.cdiv(N, tn_eff),)  # last block may be partial; Pallas masks its writes

    out_t = pl.pallas_call(
        alpha_e_kernel,
        out_shape=jax.ShapeDtypeStruct((3, N), out_dtype),
        grid_spec=pltpu.PrefetchScalarGridSpec(
            num_scalar_prefetch=0,
            grid=grid,
            in_specs=[
                pl.BlockSpec((9, tn_eff), lambda i: (0, i)),
                pl.BlockSpec((3, tn_eff), lambda i: (0, i)),
            ],
            out_specs=pl.BlockSpec((3, tn_eff), lambda i: (0, i)),
        ),
        compiler_params=pltpu.CompilerParams(
            dimension_semantics=("parallel",),
        ),
    )(a_t, e_t)

    return jnp.transpose(out_t)  # (N, 3), batch-major like the PyTorch module


if __name__ == "__main__":
    key = jax.random.PRNGKey(0)
    k1, k2 = jax.random.split(key)

    # Small batch, deliberately NOT a multiple of 8/128 (single full-extent block path).
    N = 19
    alpha = jax.random.normal(k1, (N, 3, 3), dtype=jnp.float32)
    Eext = jax.random.normal(k2, (N, 3), dtype=jnp.float32)

    out = jax.block_until_ready(alpha_e(alpha, Eext))
    ref = jnp.matmul(alpha, Eext[:, :, None]).reshape(-1, 3)
    assert out.shape == (N, 3)
    assert jnp.allclose(out, ref, atol=1e-5, rtol=1e-5), "mismatch vs reference (N=19)"

    # Exercise the multi-block path with a non-dividing tail block (no padding used).
    N2 = 300
    alpha2 = jax.random.normal(k1, (N2, 3, 3), dtype=jnp.float32)
    Eext2 = jax.random.normal(k2, (N2, 3), dtype=jnp.float32)
    out2 = jax.block_until_ready(alpha_e(alpha2, Eext2, tn=128))
    ref2 = jnp.matmul(alpha2, Eext2[:, :, None]).reshape(-1, 3)
    assert out2.shape == (N2, 3)
    assert jnp.allclose(out2, ref2, atol=1e-5, rtol=1e-5), "mismatch vs reference (N=300)"

    print("KERNEL_OK")
</pallas_src>

<mosaic_0001>
module attributes {stable_mosaic.version = 11 : i64} {
  func.func @alpha_e_kernel(%arg0: i32, %arg1: memref<9x19xf32, #tpu.memory_space<vmem>>, %arg2: memref<3x19xf32, #tpu.memory_space<vmem>>, %arg3: memref<3x19xf32, #tpu.memory_space<vmem>>) attributes {dimension_semantics = [#tpu.dimension_semantics<parallel>], iteration_bounds = array<i64: 1>, scalar_prefetch = 0 : i64, scratch_operands = 0 : i64, tpu.core_type = #tpu.core_type<tc>, window_params = [{transform_indices = @transform_0, window_bounds = array<i64: 9, 19>}, {transform_indices = @transform_1, window_bounds = array<i64: 3, 19>}, {transform_indices = @transform_2, window_bounds = array<i64: 3, 19>}]} {
    %c0 = arith.constant 0 : index
    %c0_0 = arith.constant 0 : index
    %0 = vector.load %arg1[%c0, %c0_0] : memref<9x19xf32, #tpu.memory_space<vmem>>, vector<9x19xf32>
    %c0_1 = arith.constant 0 : index
    %c0_2 = arith.constant 0 : index
    %1 = vector.load %arg2[%c0_1, %c0_2] : memref<3x19xf32, #tpu.memory_space<vmem>>, vector<3x19xf32>
    %2 = vector.extract_strided_slice %1 {offsets = [0, 0], sizes = [1, 19], strides = [1, 1]} : vector<3x19xf32> to vector<1x19xf32>
    %3 = vector.extract_strided_slice %1 {offsets = [1, 0], sizes = [1, 19], strides = [1, 1]} : vector<3x19xf32> to vector<1x19xf32>
    %4 = vector.extract_strided_slice %1 {offsets = [2, 0], sizes = [1, 19], strides = [1, 1]} : vector<3x19xf32> to vector<1x19xf32>
    %5 = vector.extract_strided_slice %0 {offsets = [0, 0], sizes = [1, 19], strides = [1, 1]} : vector<9x19xf32> to vector<1x19xf32>
    %6 = arith.mulf %5, %2 : vector<1x19xf32>
    %7 = vector.extract_strided_slice %0 {offsets = [1, 0], sizes = [1, 19], strides = [1, 1]} : vector<9x19xf32> to vector<1x19xf32>
    %8 = arith.mulf %7, %3 : vector<1x19xf32>
    %9 = arith.addf %6, %8 : vector<1x19xf32>
    %10 = vector.extract_strided_slice %0 {offsets = [2, 0], sizes = [1, 19], strides = [1, 1]} : vector<9x19xf32> to vector<1x19xf32>
    %11 = arith.mulf %10, %4 : vector<1x19xf32>
    %12 = arith.addf %9, %11 : vector<1x19xf32>
    %13 = vector.extract_strided_slice %0 {offsets = [3, 0], sizes = [1, 19], strides = [1, 1]} : vector<9x19xf32> to vector<1x19xf32>
    %14 = arith.mulf %13, %2 : vector<1x19xf32>
    %15 = vector.extract_strided_slice %0 {offsets = [4, 0], sizes = [1, 19], strides = [1, 1]} : vector<9x19xf32> to vector<1x19xf32>
    %16 = arith.mulf %15, %3 : vector<1x19xf32>
    %17 = arith.addf %14, %16 : vector<1x19xf32>
    %18 = vector.extract_strided_slice %0 {offsets = [5, 0], sizes = [1, 19], strides = [1, 1]} : vector<9x19xf32> to vector<1x19xf32>
    %19 = arith.mulf %18, %4 : vector<1x19xf32>
    %20 = arith.addf %17, %19 : vector<1x19xf32>
    %21 = vector.extract_strided_slice %0 {offsets = [6, 0], sizes = [1, 19], strides = [1, 1]} : vector<9x19xf32> to vector<1x19xf32>
    %22 = arith.mulf %21, %2 : vector<1x19xf32>
    %23 = vector.extract_strided_slice %0 {offsets = [7, 0], sizes = [1, 19], strides = [1, 1]} : vector<9x19xf32> to vector<1x19xf32>
    %24 = arith.mulf %23, %3 : vector<1x19xf32>
    %25 = arith.addf %22, %24 : vector<1x19xf32>
    %26 = vector.extract_strided_slice %0 {offsets = [8, 0], sizes = [1, 19], strides = [1, 1]} : vector<9x19xf32> to vector<1x19xf32>
    %27 = arith.mulf %26, %4 : vector<1x19xf32>
    %28 = arith.addf %25, %27 : vector<1x19xf32>
    %29 = tpu.concatenate %12, %20, %28 in 0 : vector<1x19xf32>, vector<1x19xf32>, vector<1x19xf32> -> vector<3x19xf32>
    %c0_3 = arith.constant 0 : index
    %c0_4 = arith.constant 0 : index
    %30 = vector.load %arg3[%c0_3, %c0_4] : memref<3x19xf32, #tpu.memory_space<vmem>>, vector<3x19xf32>
    tpu.vector_store %arg3[%c0_3, %c0_4], %29 {strides = array<i32>} : memref<3x19xf32, #tpu.memory_space<vmem>>, vector<3x19xf32>,
    return
  }
  func.func @transform_0(%arg0: i32) -> (i32, i32) {
    %c0_i32 = arith.constant 0 : i32
    %c0_i32_0 = arith.constant 0 : i32
    return %c0_i32, %arg0 : i32, i32
  }
  func.func @transform_1(%arg0: i32) -> (i32, i32) {
    %c0_i32 = arith.constant 0 : i32
    %c0_i32_0 = arith.constant 0 : i32
    return %c0_i32, %arg0 : i32, i32
  }
  func.func @transform_2(%arg0: i32) -> (i32, i32) {
    %c0_i32 = arith.constant 0 : i32
    %c0_i32_0 = arith.constant 0 : i32
    return %c0_i32, %arg0 : i32, i32
  }
}

</mosaic_0001>

<llo_original>
// kernel: tpu_custom_call.1
$region0: #{tpu_custom_call.1}
  #allocation0 [shape = 'u32[]', space=smem, size = 0x4, offset = 0x4, fixed_abs, tag = 'smem constant byte address 0x4 - core index']
  #allocation1 [shape = 'u32[144,128]{1,0:T(1,128)}', space=vmem, size = 0x12000, scoped, tag = 'internal scratch']
  %s0 = inlined_call_operand.hbm [shape: f32[9,19], index: 0, kind: input, shape index: {}]
  %s1 = inlined_call_operand.hbm [shape: f32[3,19], index: 1, kind: input, shape index: {}]
  %s2 = inlined_call_operand.hbm [shape: f32[3,19], index: 2, kind: output, shape index: {}]
  %s3 = sld [smem:[#allocation0]]
  $region26: #{tpu_custom_call.1} parent=0
    _
  %s5 = ssub.s32 1, %s3
  %s6 = scalar_select 0, %s5, %s3
  $region1: #{tpu_custom_call.1} parent=0
    #allocation2 [shape = 'u8[8192]{0}', space=vmem, size = 0x2000, scoped, tag = 'input window, operand 0, single buffered']
    #allocation3 [shape = 's32[1]{0}', space=sflag, size = 0x4, scoped, tag = 'scoped memory for tpu_custom_call.1']
    #allocation4 [shape = 's32[1]{0}', space=sflag, size = 0x4, scoped, tag = 'scoped memory for tpu_custom_call.1']
    #allocation5 [shape = 'u8[2048]{0}', space=vmem, size = 0x800, scoped, tag = 'input window, operand 1, single buffered']
    #allocation6 [shape = 's32[1]{0}', space=sflag, size = 0x4, scoped, tag = 'scoped memory for tpu_custom_call.1']
    #allocation7 [shape = 'u8[2048]{0}', space=vmem, size = 0x800, scoped, tag = 'output window, operand 0, single buffered']
    %7 = vsyncpa [#allocation3], 0
    %8 = vsyncpa [#allocation6], 0
    %9 = vsyncpa [#allocation4], 0
    // Predicated region
    $region2: #{tpu_custom_call.1} parent=1 // pred_check
      _
    $region3: #{tpu_custom_call.1} parent=1 // pred_check_branch
      %11 = sbr.rel (0) target = $region5
    $region4: #{tpu_custom_call.1} parent=1 // pred_region
      %s13 = ssub.s32 256, 256
      %14 = vsyncadd [#allocation3], %s13
      %s15 = sshll.u32 [#allocation2], 4
      %s16 = int_to_ptr.vmem [resolvable:$true] %s15
      %21 = dma.hbm_to_vmem [thread:$0]  %s0, 256, %s16, [#allocation3], 128, 128, 8
    $region5: #{tpu_custom_call.1} parent=1 // pred_fallthru
      _
    // Predicated region
    $region6: #{tpu_custom_call.1} parent=1 // pred_check
      _
    $region7: #{tpu_custom_call.1} parent=1 // pred_check_branch
      %23 = sbr.rel (0) target = $region9
    $region8: #{tpu_custom_call.1} parent=1 // pred_region
      %s25 = ssub.s32 64, 64
      %26 = vsyncadd [#allocation6], %s25
      %s28 = sshll.u32 [#allocation5], 4
      %s29 = int_to_ptr.vmem [resolvable:$true] %s28
      %31 = dma.hbm_to_vmem [thread:$0]  %s1, 64, %s29, [#allocation6]
    $region9: #{tpu_custom_call.1} parent=1 // pred_fallthru
      _
    // Predicated region
    $region10: #{tpu_custom_call.1} parent=1 // pred_check
      _
    $region11: #{tpu_custom_call.1} parent=1 // pred_check_branch
      %33 = sbr.rel (0) target = $region13
    $region12: #{tpu_custom_call.1} parent=1 // pred_region
      %34 = dma.done [#allocation3], 256
    $region13: #{tpu_custom_call.1} parent=1 // pred_fallthru
      _
    // Predicated region
    $region14: #{tpu_custom_call.1} parent=1 // pred_check
      _
    $region15: #{tpu_custom_call.1} parent=1 // pred_check_branch
      %36 = sbr.rel (0) target = $region17
    $region16: #{tpu_custom_call.1} parent=1 // pred_region
      %37 = dma.done [#allocation6], 64
    $region17: #{tpu_custom_call.1} parent=1 // pred_fallthru
      _
    %v38 = vld [vmem:[#allocation2] sm:$0xff]
    %v39 = vld [vmem:[#allocation2 + $0x8] sm:$0x1]
    %v40 = vld [vmem:[#allocation5] sm:$0x7]
    %v41 = vmul.f32 %v38, %v40
    %v43 = vrot.slane %v41, 1
    %v45 = vadd.f32 %v41, %v43
    %v46 = vrot.slane %v41, 2
    %v48 = vadd.f32 %v45, %v46
    %v50 = vrot.slane %v40, 5
    %v52 = vmul.f32 %v38, %v50
    %v54 = vrot.slane %v52, 1
    %v56 = vadd.f32 %v52, %v54
    %v57 = vrot.slane %v52, 2
    %v59 = vadd.f32 %v56, %v57
    %v60 = vrot.slane %v40, 2
    %v62 = vmul.f32 %v38, %v60
    %v64 = vrot.slane %v62, 1
    %v66 = vadd.f32 %v62, %v64
    %v67 = vmul.f32 %v39, %v60
    %v69 = vrot.slane %v67, 2
    %v71 = vadd.f32 %v66, %v69
    %v73 = vrot.slane %v59, 2
    %v76 = vrot.slane %v71, 4
    %vm78 = vcmask 1040384
    %v79 = vsel %vm78, %v48, %v73
    %vm80 = vcmask 1041408
    %v81 = vsel %vm80, %v79, %v76
    %vm82 = vcmask 149504
    %83 = vst.msk [vmem:[#allocation7] sm:$0x7] %vm82, %v81
    // Predicated region
    $region18: #{tpu_custom_call.1} parent=1 // pred_check
      _
    $region19: #{tpu_custom_call.1} parent=1 // pred_check_branch
      %85 = sbr.rel (0) target = $region21
    $region20: #{tpu_custom_call.1} parent=1 // pred_region
      %s87 = ssub.s32 64, 64
      %88 = vsyncadd [#allocation4], %s87
      %s90 = sshll.u32 [#allocation7], 4
      %s91 = int_to_ptr.vmem [resolvable:$true] %s90
      %93 = dma.vmem_to_hbm [thread:$0]  %s91, 64, %s2, [#allocation4]
    $region21: #{tpu_custom_call.1} parent=1 // pred_fallthru
      _
    // Predicated region
    $region22: #{tpu_custom_call.1} parent=1 // pred_check
      _
    $region23: #{tpu_custom_call.1} parent=1 // pred_check_branch
      %95 = sbr.rel (0) target = $region25
    $region24: #{tpu_custom_call.1} parent=1 // pred_region
      %96 = dma.done [#allocation4], 64
    $region25: #{tpu_custom_call.1} parent=1 // pred_fallthru
      _
    %97 = vsyncpa [#allocation3], 1
    %98 = vsyncpa [#allocation6], 1
    %99 = vsyncpa [#allocation4], 1

</llo_original>
